<compile_context>
chip_gen: v7x
topology: tpu7x:2x2x1
jax: 0.10.0
libtpu: 0.0.40
codegen_flags: <defaults>
</compile_context>

<pallas_src>
import functools

import jax
import jax.numpy as jnp
from jax import lax
from jax.experimental import pallas as pl
from jax.experimental.pallas import tpu as pltpu

DEGREE = 3          # JacobiRKAN(degree=3); must satisfy 0 < degree < 7
LANES = 1024        # lane-dense output width (large multiple of 128)


def _round_up(v, m):
    return ((v + m - 1) // m) * m


@functools.lru_cache(maxsize=1)
def _device_tuning():
    """(max_block_rows, vmem_limit_bytes, is_multicore) per TPU generation."""
    kind = ""
    try:
        kind = jax.devices()[0].device_kind.lower()
    except Exception:  # pragma: no cover - defensive, fall back to safe values
        pass
    if "v7" in kind or "7x" in kind:
        # 2048x1024 f32 tile = 8 MiB; in+out double-buffered = 32 MiB < 64 MiB phys.
        return 2048, 48 << 20, True
    # v5e / v6e (and unknown): 1024x1024 f32 tile = 4 MiB; 16 MiB buffered.
    # Explicit 32 MiB limit clears v5e's 16 MiB scoped default.
    return 1024, 32 << 20, False


def _jacobi_recurrence(t, alpha, beta, degree):
    """Reference: Jacobi P_degree^{(alpha,beta)}(t) via the 3-term recurrence."""
    p_prev = jnp.ones_like(t)  # P_0
    if degree == 0:
        return p_prev
    p_cur = 0.5 * ((alpha - beta) + (alpha + beta + 2.0) * t)  # P_1
    for n in range(2, degree + 1):
        nf = float(n)
        a = 2.0 * nf * (nf + alpha + beta) * (2.0 * nf + alpha + beta - 2.0)
        b = (2.0 * nf + alpha + beta - 1.0) * (alpha * alpha - beta * beta)
        c = ((2.0 * nf + alpha + beta - 1.0)
             * (2.0 * nf + alpha + beta)
             * (2.0 * nf + alpha + beta - 2.0))
        d = 2.0 * (nf + alpha - 1.0) * (nf + beta - 1.0) * (2.0 * nf + alpha + beta)
        p_next = ((b + c * t) * p_cur - d * p_prev) / a
        p_prev, p_cur = p_cur, p_next
    return p_cur


def _jacobi_poly_coeffs(alpha, beta, degree):
    """Coefficients c[0..degree] (ascending powers of t) of P_degree^{(alpha,beta)}.

    `degree` is a static Python int; alpha/beta are traced f32 scalars. All the
    recurrence arithmetic (including the 1/a divide) happens here, on scalars,
    once per call -- never per element in the kernel.
    Note: as in the PyTorch original, `a` can approach 0 for alpha+beta near
    -2/-4; no extra guard is added to keep semantics identical.
    """
    c_prev = [jnp.float32(1.0)]                                   # P_0 = 1
    if degree == 0:
        return c_prev
    c_cur = [0.5 * (alpha - beta), 0.5 * (alpha + beta + 2.0)]    # P_1
    for n in range(2, degree + 1):
        nf = float(n)
        a = 2.0 * nf * (nf + alpha + beta) * (2.0 * nf + alpha + beta - 2.0)
        b = (2.0 * nf + alpha + beta - 1.0) * (alpha * alpha - beta * beta)
        c = ((2.0 * nf + alpha + beta - 1.0)
             * (2.0 * nf + alpha + beta)
             * (2.0 * nf + alpha + beta - 2.0))
        d = 2.0 * (nf + alpha - 1.0) * (nf + beta - 1.0) * (2.0 * nf + alpha + beta)
        inv_a = 1.0 / a
        # p_next = ((b + c*t) * p_cur - d * p_prev) / a, on coefficient vectors.
        nxt = [jnp.float32(0.0)] * (n + 1)
        for k in range(len(c_cur)):
            nxt[k] = nxt[k] + b * c_cur[k]
            nxt[k + 1] = nxt[k + 1] + c * c_cur[k]
        for k in range(len(c_prev)):
            nxt[k] = nxt[k] - d * c_prev[k]
        nxt = [v * inv_a for v in nxt]
        c_prev, c_cur = c_cur, nxt
    return c_cur


def _jacobi_rkan_kernel(params_ref, x_ref, o_ref, *, degree, bf16_compute):
    # params_ref (SMEM): [iota_n^2, c0, c1, ..., c_degree]
    # Hoist every SMEM scalar read above the vector code so the Horner chain is
    # pure splat-operand mul/add on the VPU.
    iota_sq = params_ref[0]
    coeffs = [params_ref[1 + k] for k in range(degree + 1)]

    x = x_ref[...].astype(jnp.float32)          # upcast in-register (bf16 I/O ok)
    t = x * lax.rsqrt(x * x + iota_sq)          # rational map; rsqrt on EUP slot

    if bf16_compute:
        # Optional fast path for VALU-bound v6e/v7x bf16 activations. Slightly
        # different numerics from the f32 PyTorch path -- off by default.
        t = t.astype(jnp.bfloat16)
        coeffs = [c.astype(jnp.bfloat16) for c in coeffs]

    # Horner; degree >= 1 (module enforces 0 < degree < 7), so seed the chain
    # with the top two coefficients directly -- no full-tile broadcast init.
    acc = t * coeffs[degree] + coeffs[degree - 1]
    for k in range(degree - 2, -1, -1):
        acc = acc * t + coeffs[k]
    o_ref[...] = acc.astype(o_ref.dtype)


def jacobi_rkan_forward(x, alpha, beta, iota, degree=DEGREE, *, bf16_compute=False):
    """Pallas-backed JacobiRKAN forward. x: any float array (e.g. NCHW)."""
    if not 0 < degree < 7:
        raise ValueError("Parameter degree must be between one and six (inclusive).")
    orig_shape = x.shape
    orig_dtype = x.dtype
    n = x.size
    if n == 0:
        return x

    # Normalize learnable scalars exactly like the PyTorch module.
    alpha = jnp.reshape(alpha, ()).astype(jnp.float32)
    beta = jnp.reshape(beta, ()).astype(jnp.float32)
    iota = jnp.reshape(iota, ()).astype(jnp.float32)
    alpha_n = jnp.where(alpha > 0, alpha, jnp.expm1(alpha))   # ELU(alpha, 1)
    beta_n = jnp.where(beta > 0, beta, jnp.expm1(beta))       # ELU(beta, 1)
    iota_n = jax.nn.softplus(iota)
    iota_sq = iota_n * iota_n

    coeffs = _jacobi_poly_coeffs(alpha_n, beta_n, degree)
    params = jnp.stack(
        [iota_sq] + [jnp.asarray(c, jnp.float32) for c in coeffs]
    ).astype(jnp.float32)                                     # (degree + 2,)

    max_block_rows, vmem_limit, is_multicore = _device_tuning()

    # Lane-dense 2D slab. rows need NOT be a multiple of block_rows: the grid
    # is cdiv and Pallas masks the ragged last block's stores (elementwise
    # kernel, so garbage OOB reads never reach real outputs).
    rows = pl.cdiv(n, LANES)
    block_rows = min(max_block_rows, _round_up(rows, 8))
    # Multi-TC (v7x) split: only for genuinely large inputs, and target >= 4
    # grid steps (2 per TensorCore) so each core still double-buffers.
    if is_multicore and rows >= 256 and pl.cdiv(rows, block_rows) < 4:
        block_rows = max(8, _round_up(pl.cdiv(rows, 4), 8))
    grid = pl.cdiv(rows, block_rows)

    # Only pad up to a LANES multiple (<= 1023 elems) -- needed for the 2D
    # reshape; skipped entirely when n is already lane-aligned.
    xf = x.reshape(-1)                 # native dtype, no wrapper-side cast
    rem = n % LANES
    if rem:
        xf = jnp.pad(xf, (0, LANES - rem))
    x2d = xf.reshape(rows, LANES)

    kernel = functools.partial(
        _jacobi_rkan_kernel, degree=degree,
        bf16_compute=bool(bf16_compute) and orig_dtype == jnp.bfloat16)
    out2d = pl.pallas_call(
        kernel,
        out_shape=jax.ShapeDtypeStruct((rows, LANES), orig_dtype),
        grid=(grid,),
        in_specs=[
            pl.BlockSpec(memory_space=pltpu.MemorySpace.SMEM),    # params
            pl.BlockSpec((block_rows, LANES), lambda i: (i, 0)),  # x tile
        ],
        out_specs=pl.BlockSpec((block_rows, LANES), lambda i: (i, 0)),
        compiler_params=pltpu.CompilerParams(
            dimension_semantics=("parallel",),
            vmem_limit_bytes=vmem_limit),
    )(params, x2d)

    if rem:
        out = out2d.reshape(-1)[:n]
    else:
        out = out2d
    return out.reshape(orig_shape)


def jacobi_rkan_reference(x, alpha, beta, iota, degree=DEGREE):
    """Pure-JAX reference (3-term recurrence, per element) for verification."""
    alpha = jnp.reshape(alpha, ()).astype(jnp.float32)
    beta = jnp.reshape(beta, ()).astype(jnp.float32)
    iota = jnp.reshape(iota, ()).astype(jnp.float32)
    alpha_n = jnp.where(alpha > 0, alpha, jnp.expm1(alpha))
    beta_n = jnp.where(beta > 0, beta, jnp.expm1(beta))
    iota_n = jax.nn.softplus(iota)
    xf = x.astype(jnp.float32)
    t = xf / jnp.sqrt(xf * xf + iota_n * iota_n)
    return _jacobi_recurrence(t, alpha_n, beta_n, degree).astype(x.dtype)


if __name__ == "__main__":
    key = jax.random.PRNGKey(0)
    # Input layout: NCHW, matching PyTorch convention.
    x = jax.random.normal(key, (2, 4, 16, 16), dtype=jnp.float32)

    # Deterministic parameter init, identical to the PyTorch module (__init__):
    # alpha = beta = iota = ones(1)
    alpha = jnp.ones((), jnp.float32)
    beta = jnp.ones((), jnp.float32)
    iota = jnp.ones((), jnp.float32)

    out = jax.block_until_ready(jacobi_rkan_forward(x, alpha, beta, iota, DEGREE))
    ref = jax.block_until_ready(jacobi_rkan_reference(x, alpha, beta, iota, DEGREE))

    assert out.shape == x.shape and out.dtype == x.dtype
    assert jnp.allclose(out, ref, atol=1e-5, rtol=1e-5), "mismatch vs reference"

    # Also exercise an unaligned size (ragged last block path, no block-pad).
    x2 = jax.random.normal(jax.random.PRNGKey(1), (3, 5, 7, 11), dtype=jnp.float32)
    out2 = jax.block_until_ready(jacobi_rkan_forward(x2, alpha, beta, iota, DEGREE))
    ref2 = jacobi_rkan_reference(x2, alpha, beta, iota, DEGREE)
    assert jnp.allclose(out2, ref2, atol=1e-5, rtol=1e-5), "mismatch (unaligned)"

    print("KERNEL_OK")
</pallas_src>

<mosaic_0001>
module attributes {stable_mosaic.version = 11 : i64} {
  func.func @_jacobi_rkan_kernel(%arg0: i32, %arg1: memref<5xf32, #tpu.memory_space<smem>>, %arg2: memref<8x1024xf32, #tpu.memory_space<vmem>>, %arg3: memref<8x1024xf32, #tpu.memory_space<vmem>>) attributes {dimension_semantics = [#tpu.dimension_semantics<parallel>], iteration_bounds = array<i64: 1>, scalar_prefetch = 0 : i64, scratch_operands = 0 : i64, tpu.core_type = #tpu.core_type<tc>, window_params = [{transform_indices = @transform_0, window_bounds = array<i64: 5>}, {transform_indices = @transform_1, window_bounds = array<i64: 8, 1024>}, {transform_indices = @transform_2, window_bounds = array<i64: 8, 1024>}]} {
    %c0 = arith.constant 0 : index
    %0 = memref.load %arg1[%c0] : memref<5xf32, #tpu.memory_space<smem>>
    %c1 = arith.constant 1 : index
    %1 = memref.load %arg1[%c1] : memref<5xf32, #tpu.memory_space<smem>>
    %c2 = arith.constant 2 : index
    %2 = memref.load %arg1[%c2] : memref<5xf32, #tpu.memory_space<smem>>
    %c3 = arith.constant 3 : index
    %3 = memref.load %arg1[%c3] : memref<5xf32, #tpu.memory_space<smem>>
    %c4 = arith.constant 4 : index
    %4 = memref.load %arg1[%c4] : memref<5xf32, #tpu.memory_space<smem>>
    %c0_0 = arith.constant 0 : index
    %c0_1 = arith.constant 0 : index
    %5 = vector.load %arg2[%c0_0, %c0_1] : memref<8x1024xf32, #tpu.memory_space<vmem>>, vector<8x1024xf32>
    %6 = arith.mulf %5, %5 : vector<8x1024xf32>
    %7 = vector.broadcast %0 : f32 to vector<8x1024xf32>
    %8 = arith.addf %6, %7 : vector<8x1024xf32>
    %9 = math.rsqrt %8 : vector<8x1024xf32>
    %10 = arith.mulf %5, %9 : vector<8x1024xf32>
    %11 = vector.broadcast %4 : f32 to vector<8x1024xf32>
    %12 = arith.mulf %10, %11 : vector<8x1024xf32>
    %13 = vector.broadcast %3 : f32 to vector<8x1024xf32>
    %14 = arith.addf %12, %13 : vector<8x1024xf32>
    %15 = arith.mulf %14, %10 : vector<8x1024xf32>
    %16 = vector.broadcast %2 : f32 to vector<8x1024xf32>
    %17 = arith.addf %15, %16 : vector<8x1024xf32>
    %18 = arith.mulf %17, %10 : vector<8x1024xf32>
    %19 = vector.broadcast %1 : f32 to vector<8x1024xf32>
    %20 = arith.addf %18, %19 : vector<8x1024xf32>
    %c0_2 = arith.constant 0 : index
    %c0_3 = arith.constant 0 : index
    %21 = vector.load %arg3[%c0_2, %c0_3] : memref<8x1024xf32, #tpu.memory_space<vmem>>, vector<8x1024xf32>
    tpu.vector_store %arg3[%c0_2, %c0_3], %20 {strides = array<i32>} : memref<8x1024xf32, #tpu.memory_space<vmem>>, vector<8x1024xf32>,
    return
  }
  func.func @transform_0(%arg0: i32) -> i32 {
    %c0_i32 = arith.constant 0 : i32
    %c0_i32_0 = arith.constant 0 : i32
    return %c0_i32 : i32
  }
  func.func @transform_1(%arg0: i32) -> (i32, i32) {
    %c0_i32 = arith.constant 0 : i32
    %c0_i32_0 = arith.constant 0 : i32
    return %arg0, %c0_i32 : i32, i32
  }
  func.func @transform_2(%arg0: i32) -> (i32, i32) {
    %c0_i32 = arith.constant 0 : i32
    %c0_i32_0 = arith.constant 0 : i32
    return %arg0, %c0_i32 : i32, i32
  }
}

</mosaic_0001>

<llo_original>
// kernel: tpu_custom_call.1
$region0: #{tpu_custom_call.1}
  #allocation0 [shape = 'u32[]', space=smem, size = 0x4, offset = 0x4, fixed_abs, tag = 'smem constant byte address 0x4 - core index']
  #allocation1 [shape = 'u32[144,128]{1,0:T(1,128)}', space=vmem, size = 0x12000, scoped, tag = 'internal scratch']
  %s0 = inlined_call_operand.hbm [shape: f32[5], index: 0, kind: input, shape index: {}]
  %s1 = inlined_call_operand.hbm [shape: f32[2,1024], index: 1, kind: input, shape index: {}]
  %s2 = inlined_call_operand.hbm [shape: f32[2,1024], index: 2, kind: output, shape index: {}]
  %s3 = sld [smem:[#allocation0]]
  $region26: #{tpu_custom_call.1} parent=0
    _
  %s5 = ssub.s32 1, %s3
  %s6 = scalar_select 0, %s5, %s3
  $region1: #{tpu_custom_call.1} parent=0
    #allocation2 [shape = 'u8[512]{0}', space=smem, size = 0x200, scoped, tag = 'input window, operand 0, single buffered']
    #allocation3 [shape = 's32[1]{0}', space=sflag, size = 0x4, scoped, tag = 'scoped memory for tpu_custom_call.1']
    #allocation4 [shape = 's32[1]{0}', space=sflag, size = 0x4, scoped, tag = 'scoped memory for tpu_custom_call.1']
    #allocation5 [shape = 's32[1]{0}', space=sflag, size = 0x4, scoped, tag = 'scoped memory for tpu_custom_call.1']
    #allocation6 [shape = 'u8[32768]{0}', space=vmem, size = 0x8000, scoped, tag = 'input window, operand 1, single buffered']
    #allocation7 [shape = 'u8[32768]{0}', space=vmem, size = 0x8000, scoped, tag = 'output window, operand 0, single buffered']
    %7 = vsyncpa [#allocation5], 0
    %8 = vsyncpa [#allocation3], 0
    %9 = vsyncpa [#allocation4], 0
    // Predicated region
    $region2: #{tpu_custom_call.1} parent=1 // pred_check
      _
    $region3: #{tpu_custom_call.1} parent=1 // pred_check_branch
      %11 = sbr.rel (0) target = $region5
    $region4: #{tpu_custom_call.1} parent=1 // pred_region
      %s13 = ssub.s32 16, 16
      %14 = vsyncadd [#allocation5], %s13
      %17 = dma.hbm_to_smem %s0, 16, [#allocation2], [#allocation5]
    $region5: #{tpu_custom_call.1} parent=1 // pred_fallthru
      _
    // Predicated region
    $region6: #{tpu_custom_call.1} parent=1 // pred_check
      _
    $region7: #{tpu_custom_call.1} parent=1 // pred_check_branch
      %19 = sbr.rel (0) target = $region9
    $region8: #{tpu_custom_call.1} parent=1 // pred_region
      %s21 = ssub.s32 1024, 256
      %22 = vsyncadd [#allocation3], %s21
      %s23 = sshll.u32 [#allocation6], 4
      %s24 = int_to_ptr.vmem [resolvable:$true] %s23
      %29 = dma.hbm_to_vmem [thread:$0]  %s1, 256, %s24, [#allocation3], 256, 256, 16
    $region9: #{tpu_custom_call.1} parent=1 // pred_fallthru
      _
    // Predicated region
    $region10: #{tpu_custom_call.1} parent=1 // pred_check
      _
    $region11: #{tpu_custom_call.1} parent=1 // pred_check_branch
      %31 = sbr.rel (0) target = $region13
    $region12: #{tpu_custom_call.1} parent=1 // pred_region
      %32 = dma.done [#allocation5], 16
    $region13: #{tpu_custom_call.1} parent=1 // pred_fallthru
      _
    // Predicated region
    $region14: #{tpu_custom_call.1} parent=1 // pred_check
      _
    $region15: #{tpu_custom_call.1} parent=1 // pred_check_branch
      %34 = sbr.rel (0) target = $region17
    $region16: #{tpu_custom_call.1} parent=1 // pred_region
      %35 = dma.done [#allocation3], 1024
    $region17: #{tpu_custom_call.1} parent=1 // pred_fallthru
      _
    %36 = sfence
    %s37 = sld [smem:[#allocation2]]
    %s38 = sld [smem:[#allocation2 + $0x1]]
    %s39 = sld [smem:[#allocation2 + $0x2]]
    %s40 = sld [smem:[#allocation2 + $0x3]]
    %s41 = sld [smem:[#allocation2 + $0x4]]
    %v42 = vld [vmem:[#allocation6] sm:$0xff]
    %v43 = vld [vmem:[#allocation6 + $0x8] sm:$0xff]
    %v44 = vld [vmem:[#allocation6 + $0x10] sm:$0xff]
    %v45 = vld [vmem:[#allocation6 + $0x18] sm:$0xff]
    %v46 = vld [vmem:[#allocation6 + $0x20] sm:$0xff]
    %v47 = vld [vmem:[#allocation6 + $0x28] sm:$0xff]
    %v48 = vld [vmem:[#allocation6 + $0x30] sm:$0xff]
    %v49 = vld [vmem:[#allocation6 + $0x38] sm:$0xff]
    %v50 = vmul.f32 %v42, %v42
    %v51 = vmul.f32 %v43, %v43
    %v52 = vmul.f32 %v44, %v44
    %v53 = vmul.f32 %v45, %v45
    %v54 = vmul.f32 %v46, %v46
    %v55 = vmul.f32 %v47, %v47
    %v56 = vmul.f32 %v48, %v48
    %v57 = vmul.f32 %v49, %v49
    %v58 = vstv %s37
    %v59 = vadd.f32 %v50, %v58
    %v60 = vadd.f32 %v51, %v58
    %v61 = vadd.f32 %v52, %v58
    %v62 = vadd.f32 %v53, %v58
    %v63 = vadd.f32 %v54, %v58
    %v64 = vadd.f32 %v55, %v58
    %v65 = vadd.f32 %v56, %v58
    %v66 = vadd.f32 %v57, %v58
    %v67 = vrsqrt.pop %v59
    %v68 = vrsqrt.pop %v60
    %v69 = vrsqrt.pop %v61
    %v70 = vrsqrt.pop %v62
    %v71 = vrsqrt.pop %v63
    %v72 = vrsqrt.pop %v64
    %v73 = vrsqrt.pop %v65
    %v74 = vrsqrt.pop %v66
    %v75 = vmul.f32 %v42, %v67
    %v76 = vmul.f32 %v43, %v68
    %v77 = vmul.f32 %v44, %v69
    %v78 = vmul.f32 %v45, %v70
    %v79 = vmul.f32 %v46, %v71
    %v80 = vmul.f32 %v47, %v72
    %v81 = vmul.f32 %v48, %v73
    %v82 = vmul.f32 %v49, %v74
    %v83 = vstv %s41
    %v84 = vmul.f32 %v75, %v83
    %v85 = vmul.f32 %v76, %v83
    %v86 = vmul.f32 %v77, %v83
    %v87 = vmul.f32 %v78, %v83
    %v88 = vmul.f32 %v79, %v83
    %v89 = vmul.f32 %v80, %v83
    %v90 = vmul.f32 %v81, %v83
    %v91 = vmul.f32 %v82, %v83
    %v92 = vstv %s40
    %v93 = vadd.f32 %v84, %v92
    %v94 = vadd.f32 %v85, %v92
    %v95 = vadd.f32 %v86, %v92
    %v96 = vadd.f32 %v87, %v92
    %v97 = vadd.f32 %v88, %v92
    %v98 = vadd.f32 %v89, %v92
    %v99 = vadd.f32 %v90, %v92
    %v100 = vadd.f32 %v91, %v92
    %v101 = vmul.f32 %v93, %v75
    %v102 = vmul.f32 %v94, %v76
    %v103 = vmul.f32 %v95, %v77
    %v104 = vmul.f32 %v96, %v78
    %v105 = vmul.f32 %v97, %v79
    %v106 = vmul.f32 %v98, %v80
    %v107 = vmul.f32 %v99, %v81
    %v108 = vmul.f32 %v100, %v82
    %v109 = vstv %s39
    %v110 = vadd.f32 %v101, %v109
    %v111 = vadd.f32 %v102, %v109
    %v112 = vadd.f32 %v103, %v109
    %v113 = vadd.f32 %v104, %v109
    %v114 = vadd.f32 %v105, %v109
    %v115 = vadd.f32 %v106, %v109
    %v116 = vadd.f32 %v107, %v109
    %v117 = vadd.f32 %v108, %v109
    %v118 = vmul.f32 %v110, %v75
    %v119 = vmul.f32 %v111, %v76
    %v120 = vmul.f32 %v112, %v77
    %v121 = vmul.f32 %v113, %v78
    %v122 = vmul.f32 %v114, %v79
    %v123 = vmul.f32 %v115, %v80
    %v124 = vmul.f32 %v116, %v81
    %v125 = vmul.f32 %v117, %v82
    %v126 = vstv %s38
    %v127 = vadd.f32 %v118, %v126
    %v128 = vadd.f32 %v119, %v126
    %v129 = vadd.f32 %v120, %v126
    %v130 = vadd.f32 %v121, %v126
    %v131 = vadd.f32 %v122, %v126
    %v132 = vadd.f32 %v123, %v126
    %v133 = vadd.f32 %v124, %v126
    %v134 = vadd.f32 %v125, %v126
    %135 = vst [vmem:[#allocation7] sm:$0xff] %v127
    %136 = vst [vmem:[#allocation7 + $0x8] sm:$0xff] %v128
    %137 = vst [vmem:[#allocation7 + $0x10] sm:$0xff] %v129
    %138 = vst [vmem:[#allocation7 + $0x18] sm:$0xff] %v130
    %139 = vst [vmem:[#allocation7 + $0x20] sm:$0xff] %v131
    %140 = vst [vmem:[#allocation7 + $0x28] sm:$0xff] %v132
    %141 = vst [vmem:[#allocation7 + $0x30] sm:$0xff] %v133
    %142 = vst [vmem:[#allocation7 + $0x38] sm:$0xff] %v134
    // Predicated region
    $region18: #{tpu_custom_call.1} parent=1 // pred_check
      _
    $region19: #{tpu_custom_call.1} parent=1 // pred_check_branch
      %144 = sbr.rel (0) target = $region21
    $region20: #{tpu_custom_call.1} parent=1 // pred_region
      %s146 = ssub.s32 1024, 256
      %147 = vsyncadd [#allocation4], %s146
      %s148 = sshll.u32 [#allocation7], 4
      %s149 = int_to_ptr.vmem [resolvable:$true] %s148
      %154 = dma.vmem_to_hbm [thread:$0]  %s149, 256, %s2, [#allocation4], 256, 256, 16
    $region21: #{tpu_custom_call.1} parent=1 // pred_fallthru
      _
    // Predicated region
    $region22: #{tpu_custom_call.1} parent=1 // pred_check
      _
    $region23: #{tpu_custom_call.1} parent=1 // pred_check_branch
      %156 = sbr.rel (0) target = $region25
    $region24: #{tpu_custom_call.1} parent=1 // pred_region
      %157 = dma.done [#allocation4], 1024
    $region25: #{tpu_custom_call.1} parent=1 // pred_fallthru
      _
    %158 = vsyncpa [#allocation3], 1
    %159 = vsyncpa [#allocation4], 1
    %160 = vsyncpa [#allocation5], 1

</llo_original>
